<compile_context>
chip_gen: v5e
topology: v5e:2x2
jax: 0.10.0
libtpu: 0.0.40
codegen_flags: <defaults>
</compile_context>

<pallas_src>
import jax
import jax.numpy as jnp
from jax.experimental import pallas as pl
from jax.experimental.pallas import tpu as pltpu


def _round_up(x, m):
    return ((x + m - 1) // m) * m


def _make_mlp_kernel(n_sub, sub_rows):
    """Fused 4-layer MLP kernel; optionally split the batch tile into n_sub
    independent chains so the MXU and the VPU epilogue of different sub-tiles
    can overlap."""

    def kernel(x_ref, w1_ref, b1_ref, w2_ref, b2_ref,
               w3_ref, b3_ref, w4_ref, b4_ref, o_ref):
        def chain(xb):
            h = jnp.dot(xb, w1_ref[...], preferred_element_type=jnp.float32)
            h = jnp.maximum(h + b1_ref[...], 0.0).astype(jnp.bfloat16)
            h = jnp.dot(h, w2_ref[...], preferred_element_type=jnp.float32)
            h = jnp.maximum(h + b2_ref[...], 0.0).astype(jnp.bfloat16)
            h = jnp.dot(h, w3_ref[...], preferred_element_type=jnp.float32)
            h = jnp.maximum(h + b3_ref[...], 0.0).astype(jnp.bfloat16)
            y = jnp.dot(h, w4_ref[...], preferred_element_type=jnp.float32)
            return (y + b4_ref[...]).astype(jnp.bfloat16)

        if n_sub == 1:
            o_ref[...] = chain(x_ref[...])
        else:
            for s in range(n_sub):  # static unroll: independent chains
                rows = pl.ds(s * sub_rows, sub_rows)
                o_ref[rows, :] = chain(x_ref[rows, :])

    return kernel


def dcgan_generator_toy_forward(x, params, z_dim, *, batch_tile=512):
    """params = (w1, b1, w2, b2, w3, b3, w4, b4); weights are (in, out)."""
    w1, b1, w2, b2, w3, b3, w4, b4 = params
    nd = w1.shape[1]
    out_dim = w4.shape[1]
    out_pad = _round_up(max(out_dim, 128), 128)   # lane-dense output block
    k_pad = _round_up(max(z_dim, 128), 128)       # lane-dense x block / full MXU K

    # Mirror PyTorch's input.view(-1, z_dim).
    x2d = x.reshape(-1, z_dim)
    B = x2d.shape[0]

    # ---- batch tile selection -------------------------------------------
    if B >= 4096:                       # very large batches: allow 1024-row tiles
        batch_tile = max(batch_tile, 1024)
    TB = min(batch_tile, _round_up(B, 16))        # multiple of 16 (bf16 packing)
    # v7x has 2 TensorCores: for large batches make sure the grid has >= 2
    # steps so both cores get work under dimension_semantics=("parallel",).
    if B > 256 and _round_up(B, TB) // TB < 2:
        TB = _round_up(-(-B // 2), 16)
    B_pad = _round_up(B, TB)
    grid = (B_pad // TB,)

    # Sub-tile split inside the kernel (overlap MXU with VPU epilogue).
    n_sub = 2 if (TB >= 256 and TB % 32 == 0) else 1
    sub_rows = TB // n_sub

    # ---- operands ---------------------------------------------------------
    # Single fused pad+cast pass: one f32 read of x, one bf16 padded write.
    x_in = jnp.pad(x2d, ((0, B_pad - B), (0, k_pad - z_dim))).astype(jnp.bfloat16)

    # bf16 weights (MXU), f32 biases (epilogue precision).  Layer-1 rows are
    # zero-padded to k_pad; layer-4 cols zero-padded to out_pad so the final
    # store is lane-dense and padded outputs are exactly zero.
    w1b = jnp.zeros((k_pad, nd), jnp.bfloat16).at[:z_dim, :].set(
        w1.astype(jnp.bfloat16))
    w2b = w2.astype(jnp.bfloat16)
    w3b = w3.astype(jnp.bfloat16)
    w4b = jnp.zeros((nd, out_pad), jnp.bfloat16).at[:, :out_dim].set(
        w4.astype(jnp.bfloat16))
    b1f = b1.reshape(1, -1).astype(jnp.float32)
    b2f = b2.reshape(1, -1).astype(jnp.float32)
    b3f = b3.reshape(1, -1).astype(jnp.float32)
    b4f = jnp.zeros((1, out_pad), jnp.float32).at[:, :out_dim].set(
        b4.reshape(1, -1).astype(jnp.float32))

    # ---- VMEM budget -------------------------------------------------------
    # Single-buffered weights + double-buffered bf16 x/out streams + generous
    # allowance for compiler-held f32 (TB, nd) temps; clamp <= 32 MiB scoped.
    weight_bytes = (k_pad * nd + 2 * nd * nd + nd * out_pad) * 2 \
        + (3 * nd + out_pad) * 4
    stream_bytes = 2 * TB * (k_pad + out_pad) * 2
    scratch_bytes = 6 * TB * nd * 4
    vmem_bytes = max(16 << 20,
                     min(32 << 20,
                         _round_up(weight_bytes + stream_bytes + scratch_bytes
                                   + (4 << 20), 1 << 20)))

    # ---- block specs -------------------------------------------------------
    def stream(shape):                      # batch-streamed, double-buffered
        return pl.BlockSpec(shape, lambda i: (i, 0))

    def const(shape):                       # VMEM-resident, single-buffered
        return pl.BlockSpec(shape, lambda i: (0, 0),
                            pipeline_mode=pl.Buffered(1))

    out_padded = pl.pallas_call(
        _make_mlp_kernel(n_sub, sub_rows),
        out_shape=jax.ShapeDtypeStruct((B_pad, out_pad), jnp.bfloat16),
        grid=grid,
        in_specs=[
            stream((TB, k_pad)),
            const((k_pad, nd)),    const((1, nd)),
            const((nd, nd)),       const((1, nd)),
            const((nd, nd)),       const((1, nd)),
            const((nd, out_pad)),  const((1, out_pad)),
        ],
        out_specs=stream((TB, out_pad)),
        compiler_params=pltpu.CompilerParams(
            dimension_semantics=("parallel",),   # shard batch over v7x's 2 TCs
            vmem_limit_bytes=vmem_bytes,
        ),
    )(x_in, w1b, b1f, w2b, b2f, w3b, b3f, w4b, b4f)

    return out_padded[:B, :out_dim].astype(jnp.float32)


def init_params(key, z_dim, nd, out_dim=2):
    """Deterministic synthetic params (PyTorch-Linear-like uniform init)."""
    ks = jax.random.split(key, 8)

    def lin(kw, kb, fan_in, fan_out):
        bound = 1.0 / jnp.sqrt(fan_in)
        w = jax.random.uniform(kw, (fan_in, fan_out), jnp.float32, -bound, bound)
        b = jax.random.uniform(kb, (1, fan_out), jnp.float32, -bound, bound)
        return w, b

    w1, b1 = lin(ks[0], ks[1], z_dim, nd)
    w2, b2 = lin(ks[2], ks[3], nd, nd)
    w3, b3 = lin(ks[4], ks[5], nd, nd)
    w4, b4 = lin(ks[6], ks[7], nd, out_dim)
    return (w1, b1, w2, b2, w3, b3, w4, b4)


def _ref_mixed(x2d, params):
    """Pure-JAX mirror of the kernel's mixed precision (bf16 weights/acts,
    f32 accumulation, bf16 output)."""
    w1, b1, w2, b2, w3, b3, w4, b4 = params
    bf = jnp.bfloat16
    h = x2d.astype(bf)
    h = jnp.maximum(jnp.dot(h, w1.astype(bf), preferred_element_type=jnp.float32) + b1, 0.0).astype(bf)
    h = jnp.maximum(jnp.dot(h, w2.astype(bf), preferred_element_type=jnp.float32) + b2, 0.0).astype(bf)
    h = jnp.maximum(jnp.dot(h, w3.astype(bf), preferred_element_type=jnp.float32) + b3, 0.0).astype(bf)
    y = jnp.dot(h, w4.astype(bf), preferred_element_type=jnp.float32) + b4
    return y.astype(bf).astype(jnp.float32)


def _ref_f32(x2d, params):
    w1, b1, w2, b2, w3, b3, w4, b4 = params
    h = jnp.maximum(x2d @ w1 + b1, 0.0)
    h = jnp.maximum(h @ w2 + b2, 0.0)
    h = jnp.maximum(h @ w3 + b3, 0.0)
    return h @ w4 + b4


if __name__ == "__main__":
    Z_DIM = 32
    ND = 256          # small stand-in for the default nd=512
    OUT = 2

    key = jax.random.PRNGKey(0)
    k_x, k_p, k_x2 = jax.random.split(key, 3)
    params = init_params(k_p, Z_DIM, ND, OUT)

    # ---- case 1: small input (8, 4, 8); forward flattens to (8, 32) --------
    x = jax.random.normal(k_x, (8, 4, 8), dtype=jnp.float32)
    out = dcgan_generator_toy_forward(x, params, Z_DIM)
    out = jax.block_until_ready(out)
    assert out.shape == (8, OUT), out.shape
    assert out.dtype == jnp.float32, out.dtype

    x2d = x.reshape(-1, Z_DIM)
    ref_mix = _ref_mixed(x2d, params)
    assert jnp.allclose(out, ref_mix, atol=2e-2, rtol=2e-2), \
        float(jnp.max(jnp.abs(out - ref_mix)))
    ref_f32 = _ref_f32(x2d, params)
    assert jnp.allclose(out, ref_f32, atol=1.5e-1, rtol=5e-2), \
        float(jnp.max(jnp.abs(out - ref_f32)))

    # ---- case 2: larger batch (512, 32) exercises TB-shrink (grid=2 for the
    # v7x dual-TC path) and the in-kernel 2-way sub-tile split. --------------
    x_big = jax.random.normal(k_x2, (512, Z_DIM), dtype=jnp.float32)
    out_big = dcgan_generator_toy_forward(x_big, params, Z_DIM)
    out_big = jax.block_until_ready(out_big)
    assert out_big.shape == (512, OUT), out_big.shape

    ref_big = _ref_mixed(x_big, params)
    assert jnp.allclose(out_big, ref_big, atol=2e-2, rtol=2e-2), \
        float(jnp.max(jnp.abs(out_big - ref_big)))

    print("KERNEL_OK")
</pallas_src>

<mosaic_0001>
module attributes {stable_mosaic.version = 11 : i64} {
  func.func @kernel(%arg0: i32, %arg1: memref<16x128xbf16, #tpu.memory_space<vmem>>, %arg2: memref<128x256xbf16, #tpu.memory_space<vmem>>, %arg3: memref<1x256xf32, #tpu.memory_space<vmem>>, %arg4: memref<256x256xbf16, #tpu.memory_space<vmem>>, %arg5: memref<1x256xf32, #tpu.memory_space<vmem>>, %arg6: memref<256x256xbf16, #tpu.memory_space<vmem>>, %arg7: memref<1x256xf32, #tpu.memory_space<vmem>>, %arg8: memref<256x128xbf16, #tpu.memory_space<vmem>>, %arg9: memref<1x128xf32, #tpu.memory_space<vmem>>, %arg10: memref<16x128xbf16, #tpu.memory_space<vmem>>) attributes {dimension_semantics = [#tpu.dimension_semantics<parallel>], iteration_bounds = array<i64: 1>, scalar_prefetch = 0 : i64, scratch_operands = 0 : i64, tpu.core_type = #tpu.core_type<tc>, window_params = [{transform_indices = @transform_0, window_bounds = array<i64: 16, 128>}, {pipeline_mode = #tpu.pipeline_mode<synchronous>, transform_indices = @transform_1, window_bounds = array<i64: 128, 256>}, {pipeline_mode = #tpu.pipeline_mode<synchronous>, transform_indices = @transform_2, window_bounds = array<i64: 1, 256>}, {pipeline_mode = #tpu.pipeline_mode<synchronous>, transform_indices = @transform_3, window_bounds = array<i64: 256, 256>}, {pipeline_mode = #tpu.pipeline_mode<synchronous>, transform_indices = @transform_4, window_bounds = array<i64: 1, 256>}, {pipeline_mode = #tpu.pipeline_mode<synchronous>, transform_indices = @transform_5, window_bounds = array<i64: 256, 256>}, {pipeline_mode = #tpu.pipeline_mode<synchronous>, transform_indices = @transform_6, window_bounds = array<i64: 1, 256>}, {pipeline_mode = #tpu.pipeline_mode<synchronous>, transform_indices = @transform_7, window_bounds = array<i64: 256, 128>}, {pipeline_mode = #tpu.pipeline_mode<synchronous>, transform_indices = @transform_8, window_bounds = array<i64: 1, 128>}, {transform_indices = @transform_9, window_bounds = array<i64: 16, 128>}]} {
    %c0 = arith.constant 0 : index
    %c0_0 = arith.constant 0 : index
    %0 = vector.load %arg1[%c0, %c0_0] : memref<16x128xbf16, #tpu.memory_space<vmem>>, vector<16x128xbf16>
    %c0_1 = arith.constant 0 : index
    %c0_2 = arith.constant 0 : index
    %1 = vector.load %arg2[%c0_1, %c0_2] : memref<128x256xbf16, #tpu.memory_space<vmem>>, vector<128x256xbf16>
    %cst = arith.constant dense<0.000000e+00> : vector<16x256xf32>
    %2 = tpu.matmul %0, %1, %cst {dimension_numbers = #tpu.dot_dimension_numbers<[1], [0], [0], [1], [0, 0, 1, 1], [], []>} : vector<16x128xbf16>, vector<128x256xbf16>, vector<16x256xf32> -> vector<16x256xf32>
    %c0_3 = arith.constant 0 : index
    %c0_4 = arith.constant 0 : index
    %3 = vector.load %arg3[%c0_3, %c0_4] : memref<1x256xf32, #tpu.memory_space<vmem>>, vector<1x256xf32>
    %4 = vector.broadcast %3 : vector<1x256xf32> to vector<16x256xf32>
    %5 = arith.addf %2, %4 : vector<16x256xf32>
    %cst_5 = arith.constant 0.000000e+00 : f32
    %6 = vector.broadcast %cst_5 : f32 to vector<16x256xf32>
    %7 = arith.maximumf %5, %6 : vector<16x256xf32>
    %8 = arith.truncf %7 : vector<16x256xf32> to vector<16x256xbf16>
    %c0_6 = arith.constant 0 : index
    %c0_7 = arith.constant 0 : index
    %9 = vector.load %arg4[%c0_6, %c0_7] : memref<256x256xbf16, #tpu.memory_space<vmem>>, vector<256x256xbf16>
    %cst_8 = arith.constant dense<0.000000e+00> : vector<16x256xf32>
    %10 = tpu.matmul %8, %9, %cst_8 {dimension_numbers = #tpu.dot_dimension_numbers<[1], [0], [0], [1], [0, 0, 1, 1], [], []>} : vector<16x256xbf16>, vector<256x256xbf16>, vector<16x256xf32> -> vector<16x256xf32>
    %c0_9 = arith.constant 0 : index
    %c0_10 = arith.constant 0 : index
    %11 = vector.load %arg5[%c0_9, %c0_10] : memref<1x256xf32, #tpu.memory_space<vmem>>, vector<1x256xf32>
    %12 = vector.broadcast %11 : vector<1x256xf32> to vector<16x256xf32>
    %13 = arith.addf %10, %12 : vector<16x256xf32>
    %cst_11 = arith.constant 0.000000e+00 : f32
    %14 = vector.broadcast %cst_11 : f32 to vector<16x256xf32>
    %15 = arith.maximumf %13, %14 : vector<16x256xf32>
    %16 = arith.truncf %15 : vector<16x256xf32> to vector<16x256xbf16>
    %c0_12 = arith.constant 0 : index
    %c0_13 = arith.constant 0 : index
    %17 = vector.load %arg6[%c0_12, %c0_13] : memref<256x256xbf16, #tpu.memory_space<vmem>>, vector<256x256xbf16>
    %cst_14 = arith.constant dense<0.000000e+00> : vector<16x256xf32>
    %18 = tpu.matmul %16, %17, %cst_14 {dimension_numbers = #tpu.dot_dimension_numbers<[1], [0], [0], [1], [0, 0, 1, 1], [], []>} : vector<16x256xbf16>, vector<256x256xbf16>, vector<16x256xf32> -> vector<16x256xf32>
    %c0_15 = arith.constant 0 : index
    %c0_16 = arith.constant 0 : index
    %19 = vector.load %arg7[%c0_15, %c0_16] : memref<1x256xf32, #tpu.memory_space<vmem>>, vector<1x256xf32>
    %20 = vector.broadcast %19 : vector<1x256xf32> to vector<16x256xf32>
    %21 = arith.addf %18, %20 : vector<16x256xf32>
    %cst_17 = arith.constant 0.000000e+00 : f32
    %22 = vector.broadcast %cst_17 : f32 to vector<16x256xf32>
    %23 = arith.maximumf %21, %22 : vector<16x256xf32>
    %24 = arith.truncf %23 : vector<16x256xf32> to vector<16x256xbf16>
    %c0_18 = arith.constant 0 : index
    %c0_19 = arith.constant 0 : index
    %25 = vector.load %arg8[%c0_18, %c0_19] : memref<256x128xbf16, #tpu.memory_space<vmem>>, vector<256x128xbf16>
    %cst_20 = arith.constant dense<0.000000e+00> : vector<16x128xf32>
    %26 = tpu.matmul %24, %25, %cst_20 {dimension_numbers = #tpu.dot_dimension_numbers<[1], [0], [0], [1], [0, 0, 1, 1], [], []>} : vector<16x256xbf16>, vector<256x128xbf16>, vector<16x128xf32> -> vector<16x128xf32>
    %c0_21 = arith.constant 0 : index
    %c0_22 = arith.constant 0 : index
    %27 = vector.load %arg9[%c0_21, %c0_22] : memref<1x128xf32, #tpu.memory_space<vmem>>, vector<1x128xf32>
    %28 = vector.broadcast %27 : vector<1x128xf32> to vector<16x128xf32>
    %29 = arith.addf %26, %28 : vector<16x128xf32>
    %30 = arith.truncf %29 : vector<16x128xf32> to vector<16x128xbf16>
    %c0_23 = arith.constant 0 : index
    %c0_24 = arith.constant 0 : index
    %31 = vector.load %arg10[%c0_23, %c0_24] : memref<16x128xbf16, #tpu.memory_space<vmem>>, vector<16x128xbf16>
    tpu.vector_store %arg10[%c0_23, %c0_24], %30 {strides = array<i32>} : memref<16x128xbf16, #tpu.memory_space<vmem>>, vector<16x128xbf16>,
    return
  }
  func.func @transform_0(%arg0: i32) -> (i32, i32) {
    %c0_i32 = arith.constant 0 : i32
    %c0_i32_0 = arith.constant 0 : i32
    return %arg0, %c0_i32 : i32, i32
  }
  func.func @transform_1(%arg0: i32) -> (i32, i32) {
    %c0_i32 = arith.constant 0 : i32
    %c0_i32_0 = arith.constant 0 : i32
    %c0_i32_1 = arith.constant 0 : i32
    return %c0_i32, %c0_i32_0 : i32, i32
  }
  func.func @transform_2(%arg0: i32) -> (i32, i32) {
    %c0_i32 = arith.constant 0 : i32
    %c0_i32_0 = arith.constant 0 : i32
    %c0_i32_1 = arith.constant 0 : i32
    return %c0_i32, %c0_i32_0 : i32, i32
  }
  func.func @transform_3(%arg0: i32) -> (i32, i32) {
    %c0_i32 = arith.constant 0 : i32
    %c0_i32_0 = arith.constant 0 : i32
    %c0_i32_1 = arith.constant 0 : i32
    return %c0_i32, %c0_i32_0 : i32, i32
  }
  func.func @transform_4(%arg0: i32) -> (i32, i32) {
    %c0_i32 = arith.constant 0 : i32
    %c0_i32_0 = arith.constant 0 : i32
    %c0_i32_1 = arith.constant 0 : i32
    return %c0_i32, %c0_i32_0 : i32, i32
  }
  func.func @transform_5(%arg0: i32) -> (i32, i32) {
    %c0_i32 = arith.constant 0 : i32
    %c0_i32_0 = arith.constant 0 : i32
    %c0_i32_1 = arith.constant 0 : i32
    return %c0_i32, %c0_i32_0 : i32, i32
  }
  func.func @transform_6(%arg0: i32) -> (i32, i32) {
    %c0_i32 = arith.constant 0 : i32
    %c0_i32_0 = arith.constant 0 : i32
    %c0_i32_1 = arith.constant 0 : i32
    return %c0_i32, %c0_i32_0 : i32, i32
  }
  func.func @transform_7(%arg0: i32) -> (i32, i32) {
    %c0_i32 = arith.constant 0 : i32
    %c0_i32_0 = arith.constant 0 : i32
    %c0_i32_1 = arith.constant 0 : i32
    return %c0_i32, %c0_i32_0 : i32, i32
  }
  func.func @transform_8(%arg0: i32) -> (i32, i32) {
    %c0_i32 = arith.constant 0 : i32
    %c0_i32_0 = arith.constant 0 : i32
    %c0_i32_1 = arith.constant 0 : i32
    return %c0_i32, %c0_i32_0 : i32, i32
  }
  func.func @transform_9(%arg0: i32) -> (i32, i32) {
    %c0_i32 = arith.constant 0 : i32
    %c0_i32_0 = arith.constant 0 : i32
    return %arg0, %c0_i32 : i32, i32
  }
}

</mosaic_0001>

<llo_original>
// kernel: tpu_custom_call.1
$region0: #{tpu_custom_call.1}
  #allocation0 [shape = 'u32[]', space=smem, size = 0x4, offset = 0x4, fixed_abs, tag = 'smem constant byte address 0x4 - core index']
  #allocation1 [shape = 'u32[72,128]{1,0:T(1,128)}', space=vmem, size = 0x9000, scoped, tag = 'internal scratch']
  %s0 = inlined_call_operand.hbm [shape: bf16[16,128], index: 0, kind: input, shape index: {}]
  %s1 = inlined_call_operand.hbm [shape: bf16[128,256], index: 1, kind: input, shape index: {}]
  %s2 = inlined_call_operand.hbm [shape: f32[1,256], index: 2, kind: input, shape index: {}]
  %s3 = inlined_call_operand.hbm [shape: bf16[256,256], index: 3, kind: input, shape index: {}]
  %s4 = inlined_call_operand.vmem [shape: f32[1,256], index: 4, kind: input, shape index: {}]
  %s5 = inlined_call_operand.hbm [shape: bf16[256,256], index: 5, kind: input, shape index: {}]
  %s6 = inlined_call_operand.vmem [shape: f32[1,256], index: 6, kind: input, shape index: {}]
  %s7 = inlined_call_operand.hbm [shape: bf16[256,128], index: 7, kind: input, shape index: {}]
  %s8 = inlined_call_operand.vmem [shape: f32[1,128], index: 8, kind: input, shape index: {}]
  %s9 = inlined_call_operand.hbm [shape: bf16[16,128], index: 9, kind: output, shape index: {}]
  %s10 = sld [smem:[#allocation0]]
  $region70: #{tpu_custom_call.1} parent=0
    _
  %s12 = ssub.s32 1, %s10
  %s13 = scalar_select 0, %s12, %s10
  $region1: #{tpu_custom_call.1} parent=0
    #allocation2 [shape = 'u8[4096]{0}', space=vmem, size = 0x1000, scoped, tag = 'input window, operand 0, single buffered']
    #allocation3 [shape = 's32[1]{0}', space=sflag, size = 0x4, scoped, tag = 'scoped memory for tpu_custom_call.1']
    #allocation4 [shape = 's32[1]{0}', space=sflag, size = 0x4, scoped, tag = 'scoped memory for tpu_custom_call.1']
    #allocation5 [shape = 'u8[65536]{0}', space=vmem, size = 0x10000, scoped, tag = 'input window, operand 1, single buffered']
    #allocation6 [shape = 's32[1]{0}', space=sflag, size = 0x4, scoped, tag = 'scoped memory for tpu_custom_call.1']
    #allocation7 [shape = 'u8[1024]{0}', space=vmem, size = 0x400, scoped, tag = 'input window, operand 2, single buffered']
    #allocation8 [shape = 'u8[131072]{0}', space=vmem, size = 0x20000, scoped, tag = 'input window, operand 3, single buffered']
    #allocation9 [shape = 's32[1]{0}', space=sflag, size = 0x4, scoped, tag = 'scoped memory for tpu_custom_call.1']
    #allocation10 [shape = 'u8[131072]{0}', space=vmem, size = 0x20000, scoped, tag = 'input window, operand 5, single buffered']
    #allocation11 [shape = 'u8[65536]{0}', space=vmem, size = 0x10000, scoped, tag = 'input window, operand 7, single buffered']
    #allocation12 [shape = 's32[1]{0}', space=sflag, size = 0x4, scoped, tag = 'scoped memory for tpu_custom_call.1']
    #allocation13 [shape = 'u8[4096]{0}', space=vmem, size = 0x1000, scoped, tag = 'output window, operand 0, single buffered']
    %14 = vsyncpa [#allocation3], 0
    %15 = vsyncpa [#allocation6], 0
    %16 = vsyncpa [#allocation9], 0
    %17 = vsyncpa [#allocation12], 0
    %18 = vsyncpa [#allocation4], 0
    // Predicated region
    $region2: #{tpu_custom_call.1} parent=1 // pred_check
      _
    $region3: #{tpu_custom_call.1} parent=1 // pred_check_branch
      %20 = sbr.rel (0) target = $region5
    $region4: #{tpu_custom_call.1} parent=1 // pred_region
      %22 = vsyncadd [#allocation3], 0
      %s23 = sshll.u32 %s0, 4
      %s24 = int_to_ptr.hbm [resolvable:$true] %s23
      %s25 = sshll.u32 [#allocation2], 4
      %s26 = int_to_ptr.vmem [resolvable:$true] %s25
      %31 = dma.hbm_to_vmem [thread:$0]  %s24, 128, %s26, [#allocation3], 64, 64, 4
    $region5: #{tpu_custom_call.1} parent=1 // pred_fallthru
      _
    // Predicated region
    $region6: #{tpu_custom_call.1} parent=1 // pred_check
      _
    $region7: #{tpu_custom_call.1} parent=1 // pred_check_branch
      %33 = sbr.rel (0) target = $region9
    $region8: #{tpu_custom_call.1} parent=1 // pred_region
      %35 = vsyncadd [#allocation6], 0
      %s36 = sshll.u32 %s1, 4
      %s37 = int_to_ptr.hbm [resolvable:$true] %s36
      %s38 = sshll.u32 [#allocation5], 4
      %s39 = int_to_ptr.vmem [resolvable:$true] %s38
      %44 = dma.hbm_to_vmem [thread:$0]  %s37, 2048, %s39, [#allocation6], 128, 128, 8
    $region9: #{tpu_custom_call.1} parent=1 // pred_fallthru
      _
    // Predicated region
    $region10: #{tpu_custom_call.1} parent=1 // pred_check
      _
    $region11: #{tpu_custom_call.1} parent=1 // pred_check_branch
      %46 = sbr.rel (0) target = $region13
    $region12: #{tpu_custom_call.1} parent=1 // pred_region
      %48 = vsyncadd [#allocation6], 0
      %s50 = sshll.u32 %s2, 4
      %s51 = int_to_ptr.hbm [resolvable:$true] %s50
      %s52 = sshll.u32 [#allocation7], 4
      %s53 = int_to_ptr.vmem [resolvable:$true] %s52
      %55 = dma.hbm_to_vmem [thread:$0]  %s51, 32, %s53, [#allocation6]
    $region13: #{tpu_custom_call.1} parent=1 // pred_fallthru
      _
    // Predicated region
    $region14: #{tpu_custom_call.1} parent=1 // pred_check
      _
    $region15: #{tpu_custom_call.1} parent=1 // pred_check_branch
      %57 = sbr.rel (0) target = $region17
    $region16: #{tpu_custom_call.1} parent=1 // pred_region
      %59 = vsyncadd [#allocation9], 0
      %s60 = sshll.u32 %s3, 4
      %s61 = int_to_ptr.hbm [resolvable:$true] %s60
      %s62 = sshll.u32 [#allocation8], 4
      %s63 = int_to_ptr.vmem [resolvable:$true] %s62
      %68 = dma.hbm_to_vmem [thread:$0]  %s61, 4096, %s63, [#allocation9], 128, 128, 8
    $region17: #{tpu_custom_call.1} parent=1 // pred_fallthru
      _
    // Predicated region
    $region18: #{tpu_custom_call.1} parent=1 // pred_check
      _
    $region19: #{tpu_custom_call.1} parent=1 // pred_check_branch
      %70 = sbr.rel (0) target = $region21
    $region20: #{tpu_custom_call.1} parent=1 // pred_region
      _
    $region21: #{tpu_custom_call.1} parent=1 // pred_fallthru
      _
    // Predicated region
    $region22: #{tpu_custom_call.1} parent=1 // pred_check
      _
    $region23: #{tpu_custom_call.1} parent=1 // pred_check_branch
      %72 = sbr.rel (0) target = $region25
    $region24: #{tpu_custom_call.1} parent=1 // pred_region
      %74 = vsyncadd [#allocation9], 0
      %s75 = sshll.u32 %s5, 4
      %s76 = int_to_ptr.hbm [resolvable:$true] %s75
      %s77 = sshll.u32 [#allocation10], 4
      %s78 = int_to_ptr.vmem [resolvable:$true] %s77
      %83 = dma.hbm_to_vmem [thread:$0]  %s76, 4096, %s78, [#allocation9], 128, 128, 8
    $region25: #{tpu_custom_call.1} parent=1 // pred_fallthru
      _
    // Predicated region
    $region26: #{tpu_custom_call.1} parent=1 // pred_check
      _
    $region27: #{tpu_custom_call.1} parent=1 // pred_check_branch
      %85 = sbr.rel (0) target = $region29
    $region28: #{tpu_custom_call.1} parent=1 // pred_region
      _
    $region29: #{tpu_custom_call.1} parent=1 // pred_fallthru
      _
    // Predicated region
    $region30: #{tpu_custom_call.1} parent=1 // pred_check
      _
    $region31: #{tpu_custom_call.1} parent=1 // pred_check_branch
      %87 = sbr.rel (0) target = $region33
    $region32: #{tpu_custom_call.1} parent=1 // pred_region
      %89 = vsyncadd [#allocation12], 0
      %s90 = sshll.u32 %s7, 4
      %s91 = int_to_ptr.hbm [resolvable:$true] %s90
      %s92 = sshll.u32 [#allocation11], 4
      %s93 = int_to_ptr.vmem [resolvable:$true] %s92
      %98 = dma.hbm_to_vmem [thread:$0]  %s91, 2048, %s93, [#allocation12], 64, 64, 4
    $region33: #{tpu_custom_call.1} parent=1 // pred_fallthru
      _
    // Predicated region
    $region34: #{tpu_custom_call.1} parent=1 // pred_check
      _
    $region35: #{tpu_custom_call.1} parent=1 // pred_check_branch
      %100 = sbr.rel (0) target = $region37
    $region36: #{tpu_custom_call.1} parent=1 // pred_region
      _
    $region37: #{tpu_custom_call.1} parent=1 // pred_fallthru
      _
    // Predicated region
    $region38: #{tpu_custom_call.1} parent=1 // pred_check
      _
    $region39: #{tpu_custom_call.1} parent=1 // pred_check_branch
      %102 = sbr.rel (0) target = $region41
    $region40: #{tpu_custom_call.1} parent=1 // pred_region
      %104 = dma.done [#allocation3], 128
    $region41: #{tpu_custom_call.1} parent=1 // pred_fallthru
      _
    // Predicated region
    $region42: #{tpu_custom_call.1} parent=1 // pred_check
      _
    $region43: #{tpu_custom_call.1} parent=1 // pred_check_branch
      %106 = sbr.rel (0) target = $region45
    $region44: #{tpu_custom_call.1} parent=1 // pred_region
      %108 = dma.done [#allocation6], 2048
    $region45: #{tpu_custom_call.1} parent=1 // pred_fallthru
      _
    // Predicated region
    $region46: #{tpu_custom_call.1} parent=1 // pred_check
      _
    $region47: #{tpu_custom_call.1} parent=1 // pred_check_branch
      %110 = sbr.rel (0) target = $region49
    $region48: #{tpu_custom_call.1} parent=1 // pred_region
      %112 = dma.done [#allocation6], 32
    $region49: #{tpu_custom_call.1} parent=1 // pred_fallthru
      _
    // Predicated region
    $region50: #{tpu_custom_call.1} parent=1 // pred_check
      _
    $region51: #{tpu_custom_call.1} parent=1 // pred_check_branch
      %114 = sbr.rel (0) target = $region53
    $region52: #{tpu_custom_call.1} parent=1 // pred_region
      %116 = dma.done [#allocation9], 4096
    $region53: #{tpu_custom_call.1} parent=1 // pred_fallthru
      _
    // Predicated region
    $region54: #{tpu_custom_call.1} parent=1 // pred_check
      _
    $region55: #{tpu_custom_call.1} parent=1 // pred_check_branch
      %118 = sbr.rel (0) target = $region57
    $region56: #{tpu_custom_call.1} parent=1 // pred_region
      %120 = dma.done [#allocation9], 4096
    $region57: #{tpu_custom_call.1} parent=1 // pred_fallthru
      _
    // Predicated region
    $region58: #{tpu_custom_call.1} parent=1 // pred_check
      _
    $region59: #{tpu_custom_call.1} parent=1 // pred_check_branch
      %122 = sbr.rel (0) target = $region61
    $region60: #{tpu_custom_call.1} parent=1 // pred_region
      %124 = dma.done [#allocation12], 2048
    $region61: #{tpu_custom_call.1} parent=1 // pred_fallthru
      _
    %v125 = vld [vmem:[#allocation2] sm:$0xf]
    %v126 = vld [vmem:[#allocation2 + $0x4] sm:$0xf]
    %v127 = vld [vmem:[#allocation5] sm:$0xff]
    %v128 = vld [vmem:[#allocation5 + $0x8] sm:$0xff]
    %v129 = vld [vmem:[#allocation5 + $0x10] sm:$0xff]
    %v130 = vld [vmem:[#allocation5 + $0x18] sm:$0xff]
    %v131 = vld [vmem:[#allocation5 + $0x20] sm:$0xff]
    %v132 = vld [vmem:[#allocation5 + $0x28] sm:$0xff]
    %v133 = vld [vmem:[#allocation5 + $0x30] sm:$0xff]
    %v134 = vld [vmem:[#allocation5 + $0x38] sm:$0xff]
    %v135 = vld [vmem:[#allocation5 + $0x40] sm:$0xff]
    %v136 = vld [vmem:[#allocation5 + $0x48] sm:$0xff]
    %v137 = vld [vmem:[#allocation5 + $0x50] sm:$0xff]
    %v138 = vld [vmem:[#allocation5 + $0x58] sm:$0xff]
    %v139 = vld [vmem:[#allocation5 + $0x60] sm:$0xff]
    %v140 = vld [vmem:[#allocation5 + $0x68] sm:$0xff]
    %v141 = vld [vmem:[#allocation5 + $0x70] sm:$0xff]
    %v142 = vld [vmem:[#allocation5 + $0x78] sm:$0xff]
    %v143 = vld [vmem:[#allocation7] sm:$0x3]
    %v145 = vperm.slane %v143, 0
    %v146 = vperm.slane %v143, 1
    %v151 = vunpack.c.l.b16 %v125
    %v152 = vunpack.c.l.b16 %v126
    %v153 = vpack.c.b16 %v152, %v151
    %v171 = vunpack.c.l.b16 %v127
    %v172 = vunpack.c.h.b16 %v127
    %v173 = vunpack.c.l.b16 %v128
    %v174 = vunpack.c.h.b16 %v128
    %v175 = vunpack.c.l.b16 %v129
    %v176 = vunpack.c.h.b16 %v129
    %v177 = vunpack.c.l.b16 %v130
    %v178 = vunpack.c.h.b16 %v130
    %v179 = vunpack.c.l.b16 %v131
    %v180 = vunpack.c.h.b16 %v131
    %v181 = vunpack.c.l.b16 %v132
    %v182 = vunpack.c.h.b16 %v132
    %v183 = vunpack.c.l.b16 %v133
    %v184 = vunpack.c.h.b16 %v133
    %v185 = vunpack.c.l.b16 %v134
    %v186 = vunpack.c.h.b16 %v134
    %v187 = vunpack.c.l.b16 %v135
    %v188 = vunpack.c.h.b16 %v135
    %v189 = vunpack.c.l.b16 %v136
    %v190 = vunpack.c.h.b16 %v136
    %v191 = vunpack.c.l.b16 %v137
    %v192 = vunpack.c.h.b16 %v137
    %v193 = vunpack.c.l.b16 %v138
    %v194 = vunpack.c.h.b16 %v138
    %v195 = vunpack.c.l.b16 %v139
    %v196 = vunpack.c.h.b16 %v139
    %v197 = vunpack.c.l.b16 %v140
    %v198 = vunpack.c.h.b16 %v140
    %v199 = vunpack.c.l.b16 %v141
    %v200 = vunpack.c.h.b16 %v141
    %v201 = vunpack.c.l.b16 %v142
    %v202 = vunpack.c.h.b16 %v142
    %v203 = vpack.c.b16 %v173, %v171
    %v204 = vpack.c.b16 %v174, %v172
    %v205 = vpack.c.b16 %v177, %v175
    %v206 = vpack.c.b16 %v178, %v176
    %v207 = vpack.c.b16 %v181, %v179
    %v208 = vpack.c.b16 %v182, %v180
    %v209 = vpack.c.b16 %v185, %v183
    %v210 = vpack.c.b16 %v186, %v184
    %v211 = vpack.c.b16 %v189, %v187
    %v212 = vpack.c.b16 %v190, %v188
    %v213 = vpack.c.b16 %v193, %v191
    %v214 = vpack.c.b16 %v194, %v192
    %v215 = vpack.c.b16 %v197, %v195
    %v216 = vpack.c.b16 %v198, %v196
    %v217 = vpack.c.b16 %v201, %v199
    %v218 = vpack.c.b16 %v202, %v200
    %235 = vmatpush.bf16.msra.mxu0 %v217
    %236 = vmatpush.bf16.msra.mxu0 %v215
    %237 = vmatpush.bf16.msra.mxu0 %v213
    %238 = vmatpush.bf16.msra.mxu0 %v211
    %239 = vmatpush.bf16.msra.mxu0 %v209
    %240 = vmatpush.bf16.msra.mxu0 %v207
    %241 = vmatpush.bf16.msra.mxu0 %v205
    %242 = vmatpush.bf16.msra.mxu0 %v203
    %243 = vmatmul.bf16.gmra.mxu0 %v153
    %v244 = vpop.f32.mrf.mxu0
    %v245 = vadd.f32 %v145, %v244
    %v246 = vpop.f32.mrf.mxu0
    %v247 = vadd.f32 %v145, %v246
    %248 = vdwg.mxu0
    %249 = vmatpush.bf16.msra.mxu0 %v218
    %250 = vmatpush.bf16.msra.mxu0 %v216
    %251 = vmatpush.bf16.msra.mxu0 %v214
    %252 = vmatpush.bf16.msra.mxu0 %v212
    %253 = vmatpush.bf16.msra.mxu0 %v210
    %254 = vmatpush.bf16.msra.mxu0 %v208
    %255 = vmatpush.bf16.msra.mxu0 %v206
    %256 = vmatpush.bf16.msra.mxu0 %v204
    %257 = vmatmul.bf16.gmra.mxu0 %v153
    %v258 = vpop.f32.mrf.mxu0
    %v259 = vadd.f32 %v146, %v258
    %v260 = vpop.f32.mrf.mxu0
    %v261 = vadd.f32 %v146, %v260
    %262 = vdwg.mxu0
    %v263 = vmax.f32 %v245, 0.0
    %v264 = vmax.f32 %v259, 0.0
    %v265 = vmax.f32 %v247, 0.0
    %v266 = vmax.f32 %v261, 0.0
    %v267 = vpack.c.bf16 %v265, %v263
    %v268 = vpack.c.bf16 %v266, %v264
    %v269 = vld [vmem:[#allocation8] sm:$0xff]
    %v270 = vld [vmem:[#allocation8 + $0x8] sm:$0xff]
    %v271 = vld [vmem:[#allocation8 + $0x10] sm:$0xff]
    %v272 = vld [vmem:[#allocation8 + $0x18] sm:$0xff]
    %v273 = vld [vmem:[#allocation8 + $0x20] sm:$0xff]
    %v274 = vld [vmem:[#allocation8 + $0x28] sm:$0xff]
    %v275 = vld [vmem:[#allocation8 + $0x30] sm:$0xff]
    %v276 = vld [vmem:[#allocation8 + $0x38] sm:$0xff]
    %v277 = vld [vmem:[#allocation8 + $0x40] sm:$0xff]
    %v278 = vld [vmem:[#allocation8 + $0x48] sm:$0xff]
    %v279 = vld [vmem:[#allocation8 + $0x50] sm:$0xff]
    %v280 = vld [vmem:[#allocation8 + $0x58] sm:$0xff]
    %v281 = vld [vmem:[#allocation8 + $0x60] sm:$0xff]
    %v282 = vld [vmem:[#allocation8 + $0x68] sm:$0xff]
    %v283 = vld [vmem:[#allocation8 + $0x70] sm:$0xff]
    %v284 = vld [vmem:[#allocation8 + $0x78] sm:$0xff]
    %v285 = vld [vmem:[#allocation8 + $0x80] sm:$0xff]
    %v286 = vld [vmem:[#allocation8 + $0x88] sm:$0xff]
    %v287 = vld [vmem:[#allocation8 + $0x90] sm:$0xff]
    %v288 = vld [vmem:[#allocation8 + $0x98] sm:$0xff]
    %v289 = vld [vmem:[#allocation8 + $0xa0] sm:$0xff]
    %v290 = vld [vmem:[#allocation8 + $0xa8] sm:$0xff]
    %v291 = vld [vmem:[#allocation8 + $0xb0] sm:$0xff]
    %v292 = vld [vmem:[#allocation8 + $0xb8] sm:$0xff]
    %v293 = vld [vmem:[#allocation8 + $0xc0] sm:$0xff]
    %v294 = vld [vmem:[#allocation8 + $0xc8] sm:$0xff]
    %v295 = vld [vmem:[#allocation8 + $0xd0] sm:$0xff]
    %v296 = vld [vmem:[#allocation8 + $0xd8] sm:$0xff]
    %v297 = vld [vmem:[#allocation8 + $0xe0] sm:$0xff]
    %v298 = vld [vmem:[#allocation8 + $0xe8] sm:$0xff]
    %v299 = vld [vmem:[#allocation8 + $0xf0] sm:$0xff]
    %v300 = vld [vmem:[#allocation8 + $0xf8] sm:$0xff]
    %v301 = vld [vmem:[%s4] sm:$0x3]
    %v303 = vperm.slane %v301, 0
    %v304 = vperm.slane %v301, 1
    %v339 = vunpack.c.l.b16 %v269
    %v340 = vunpack.c.h.b16 %v269
    %v341 = vunpack.c.l.b16 %v270
    %v342 = vunpack.c.h.b16 %v270
    %v343 = vunpack.c.l.b16 %v271
    %v344 = vunpack.c.h.b16 %v271
    %v345 = vunpack.c.l.b16 %v272
    %v346 = vunpack.c.h.b16 %v272
    %v347 = vunpack.c.l.b16 %v273
    %v348 = vunpack.c.h.b16 %v273
    %v349 = vunpack.c.l.b16 %v274
    %v350 = vunpack.c.h.b16 %v274
    %v351 = vunpack.c.l.b16 %v275
    %v352 = vunpack.c.h.b16 %v275
    %v353 = vunpack.c.l.b16 %v276
    %v354 = vunpack.c.h.b16 %v276
    %v355 = vunpack.c.l.b16 %v277
    %v356 = vunpack.c.h.b16 %v277
    %v357 = vunpack.c.l.b16 %v278
    %v358 = vunpack.c.h.b16 %v278
    %v359 = vunpack.c.l.b16 %v279
    %v360 = vunpack.c.h.b16 %v279
    %v361 = vunpack.c.l.b16 %v280
    %v362 = vunpack.c.h.b16 %v280
    %v363 = vunpack.c.l.b16 %v281
    %v364 = vunpack.c.h.b16 %v281
    %v365 = vunpack.c.l.b16 %v282
    %v366 = vunpack.c.h.b16 %v282
    %v367 = vunpack.c.l.b16 %v283
    %v368 = vunpack.c.h.b16 %v283
    %v369 = vunpack.c.l.b16 %v284
    %v370 = vunpack.c.h.b16 %v284
    %v371 = vunpack.c.l.b16 %v285
    %v372 = vunpack.c.h.b16 %v285
    %v373 = vunpack.c.l.b16 %v286
    %v374 = vunpack.c.h.b16 %v286
    %v375 = vunpack.c.l.b16 %v287
    %v376 = vunpack.c.h.b16 %v287
    %v377 = vunpack.c.l.b16 %v288
    %v378 = vunpack.c.h.b16 %v288
    %v379 = vunpack.c.l.b16 %v289
    %v380 = vunpack.c.h.b16 %v289
    %v381 = vunpack.c.l.b16 %v290
    %v382 = vunpack.c.h.b16 %v290
    %v383 = vunpack.c.l.b16 %v291
    %v384 = vunpack.c.h.b16 %v291
    %v385 = vunpack.c.l.b16 %v292
    %v386 = vunpack.c.h.b16 %v292
    %v387 = vunpack.c.l.b16 %v293
    %v388 = vunpack.c.h.b16 %v293
    %v389 = vunpack.c.l.b16 %v294
    %v390 = vunpack.c.h.b16 %v294
    %v391 = vunpack.c.l.b16 %v295
    %v392 = vunpack.c.h.b16 %v295
    %v393 = vunpack.c.l.b16 %v296
    %v394 = vunpack.c.h.b16 %v296
    %v395 = vunpack.c.l.b16 %v297
    %v396 = vunpack.c.h.b16 %v297
    %v397 = vunpack.c.l.b16 %v298
    %v398 = vunpack.c.h.b16 %v298
    %v399 = vunpack.c.l.b16 %v299
    %v400 = vunpack.c.h.b16 %v299
    %v401 = vunpack.c.l.b16 %v300
    %v402 = vunpack.c.h.b16 %v300
    %v403 = vpack.c.b16 %v341, %v339
    %v404 = vpack.c.b16 %v342, %v340
    %v405 = vpack.c.b16 %v345, %v343
    %v406 = vpack.c.b16 %v346, %v344
    %v407 = vpack.c.b16 %v349, %v347
    %v408 = vpack.c.b16 %v350, %v348
    %v409 = vpack.c.b16 %v353, %v351
    %v410 = vpack.c.b16 %v354, %v352
    %v411 = vpack.c.b16 %v357, %v355
    %v412 = vpack.c.b16 %v358, %v356
    %v413 = vpack.c.b16 %v361, %v359
    %v414 = vpack.c.b16 %v362, %v360
    %v415 = vpack.c.b16 %v365, %v363
    %v416 = vpack.c.b16 %v366, %v364
    %v417 = vpack.c.b16 %v369, %v367
    %v418 = vpack.c.b16 %v370, %v368
    %v419 = vpack.c.b16 %v373, %v371
    %v420 = vpack.c.b16 %v374, %v372
    %v421 = vpack.c.b16 %v377, %v375
    %v422 = vpack.c.b16 %v378, %v376
    %v423 = vpack.c.b16 %v381, %v379
    %v424 = vpack.c.b16 %v382, %v380
    %v425 = vpack.c.b16 %v385, %v383
    %v426 = vpack.c.b16 %v386, %v384
    %v427 = vpack.c.b16 %v389, %v387
    %v428 = vpack.c.b16 %v390, %v388
    %v429 = vpack.c.b16 %v393, %v391
    %v430 = vpack.c.b16 %v394, %v392
    %v431 = vpack.c.b16 %v397, %v395
    %v432 = vpack.c.b16 %v398, %v396
    %v433 = vpack.c.b16 %v401, %v399
    %v434 = vpack.c.b16 %v402, %v400
    %467 = vmatpush.bf16.msra.mxu0 %v417
    %468 = vmatpush.bf16.msra.mxu0 %v415
    %469 = vmatpush.bf16.msra.mxu0 %v413
    %470 = vmatpush.bf16.msra.mxu0 %v411
    %471 = vmatpush.bf16.msra.mxu0 %v409
    %472 = vmatpush.bf16.msra.mxu0 %v407
    %473 = vmatpush.bf16.msra.mxu0 %v405
    %474 = vmatpush.bf16.msra.mxu0 %v403
    %475 = vmatmul.bf16.gmra.mxu0 %v267
    %v476 = vpop.f32.mrf.mxu0
    %v477 = vadd.f32 %v303, %v476
    %v478 = vpop.f32.mrf.mxu0
    %v479 = vadd.f32 %v303, %v478
    %480 = vdwg.mxu0
    %481 = vmatpush.bf16.msra.mxu0 %v433
    %482 = vmatpush.bf16.msra.mxu0 %v431
    %483 = vmatpush.bf16.msra.mxu0 %v429
    %484 = vmatpush.bf16.msra.mxu0 %v427
    %485 = vmatpush.bf16.msra.mxu0 %v425
    %486 = vmatpush.bf16.msra.mxu0 %v423
    %487 = vmatpush.bf16.msra.mxu0 %v421
    %488 = vmatpush.bf16.msra.mxu0 %v419
    %489 = vmatmul.bf16.gmra.mxu0 %v268
    %v490 = vpop.f32.mrf.mxu0
    %v491 = vadd.f32 %v477, %v490
    %v492 = vpop.f32.mrf.mxu0
    %v493 = vadd.f32 %v479, %v492
    %494 = vdwg.mxu0
    %495 = vmatpush.bf16.msra.mxu0 %v418
    %496 = vmatpush.bf16.msra.mxu0 %v416
    %497 = vmatpush.bf16.msra.mxu0 %v414
    %498 = vmatpush.bf16.msra.mxu0 %v412
    %499 = vmatpush.bf16.msra.mxu0 %v410
    %500 = vmatpush.bf16.msra.mxu0 %v408
    %501 = vmatpush.bf16.msra.mxu0 %v406
    %502 = vmatpush.bf16.msra.mxu0 %v404
    %503 = vmatmul.bf16.gmra.mxu0 %v267
    %v504 = vpop.f32.mrf.mxu0
    %v505 = vadd.f32 %v304, %v504
    %v506 = vpop.f32.mrf.mxu0
    %v507 = vadd.f32 %v304, %v506
    %508 = vdwg.mxu0
    %509 = vmatpush.bf16.msra.mxu0 %v434
    %510 = vmatpush.bf16.msra.mxu0 %v432
    %511 = vmatpush.bf16.msra.mxu0 %v430
    %512 = vmatpush.bf16.msra.mxu0 %v428
    %513 = vmatpush.bf16.msra.mxu0 %v426
    %514 = vmatpush.bf16.msra.mxu0 %v424
    %515 = vmatpush.bf16.msra.mxu0 %v422
    %516 = vmatpush.bf16.msra.mxu0 %v420
    %517 = vmatmul.bf16.gmra.mxu0 %v268
    %v518 = vpop.f32.mrf.mxu0
    %v519 = vadd.f32 %v505, %v518
    %v520 = vpop.f32.mrf.mxu0
    %v521 = vadd.f32 %v507, %v520
    %522 = vdwg.mxu0
    %v523 = vmax.f32 %v491, 0.0
    %v524 = vmax.f32 %v519, 0.0
    %v525 = vmax.f32 %v493, 0.0
    %v526 = vmax.f32 %v521, 0.0
    %v527 = vpack.c.bf16 %v525, %v523
    %v528 = vpack.c.bf16 %v526, %v524
    %v529 = vld [vmem:[#allocation10] sm:$0xff]
    %v530 = vld [vmem:[#allocation10 + $0x8] sm:$0xff]
    %v531 = vld [vmem:[#allocation10 + $0x10] sm:$0xff]
    %v532 = vld [vmem:[#allocation10 + $0x18] sm:$0xff]
    %v533 = vld [vmem:[#allocation10 + $0x20] sm:$0xff]
    %v534 = vld [vmem:[#allocation10 + $0x28] sm:$0xff]
    %v535 = vld [vmem:[#allocation10 + $0x30] sm:$0xff]
    %v536 = vld [vmem:[#allocation10 + $0x38] sm:$0xff]
    %v537 = vld [vmem:[#allocation10 + $0x40] sm:$0xff]
    %v538 = vld [vmem:[#allocation10 + $0x48] sm:$0xff]
    %v539 = vld [vmem:[#allocation10 + $0x50] sm:$0xff]
    %v540 = vld [vmem:[#allocation10 + $0x58] sm:$0xff]
    %v541 = vld [vmem:[#allocation10 + $0x60] sm:$0xff]
    %v542 = vld [vmem:[#allocation10 + $0x68] sm:$0xff]
    %v543 = vld [vmem:[#allocation10 + $0x70] sm:$0xff]
    %v544 = vld [vmem:[#allocation10 + $0x78] sm:$0xff]
    %v545 = vld [vmem:[#allocation10 + $0x80] sm:$0xff]
    %v546 = vld [vmem:[#allocation10 + $0x88] sm:$0xff]
    %v547 = vld [vmem:[#allocation10 + $0x90] sm:$0xff]
    %v548 = vld [vmem:[#allocation10 + $0x98] sm:$0xff]
    %v549 = vld [vmem:[#allocation10 + $0xa0] sm:$0xff]
    %v550 = vld [vmem:[#allocation10 + $0xa8] sm:$0xff]
    %v551 = vld [vmem:[#allocation10 + $0xb0] sm:$0xff]
    %v552 = vld [vmem:[#allocation10 + $0xb8] sm:$0xff]
    %v553 = vld [vmem:[#allocation10 + $0xc0] sm:$0xff]
    %v554 = vld [vmem:[#allocation10 + $0xc8] sm:$0xff]
    %v555 = vld [vmem:[#allocation10 + $0xd0] sm:$0xff]
    %v556 = vld [vmem:[#allocation10 + $0xd8] sm:$0xff]
    %v557 = vld [vmem:[#allocation10 + $0xe0] sm:$0xff]
    %v558 = vld [vmem:[#allocation10 + $0xe8] sm:$0xff]
    %v559 = vld [vmem:[#allocation10 + $0xf0] sm:$0xff]
    %v560 = vld [vmem:[#allocation10 + $0xf8] sm:$0xff]
    %v561 = vld [vmem:[%s6] sm:$0x3]
    %v563 = vperm.slane %v561, 0
    %v564 = vperm.slane %v561, 1
    %v599 = vunpack.c.l.b16 %v529
    %v600 = vunpack.c.h.b16 %v529
    %v601 = vunpack.c.l.b16 %v530
    %v602 = vunpack.c.h.b16 %v530
    %v603 = vunpack.c.l.b16 %v531
    %v604 = vunpack.c.h.b16 %v531
    %v605 = vunpack.c.l.b16 %v532
    %v606 = vunpack.c.h.b16 %v532
    %v607 = vunpack.c.l.b16 %v533
    %v608 = vunpack.c.h.b16 %v533
    %v609 = vunpack.c.l.b16 %v534
    %v610 = vunpack.c.h.b16 %v534
    %v611 = vunpack.c.l.b16 %v535
    %v612 = vunpack.c.h.b16 %v535
    %v613 = vunpack.c.l.b16 %v536
    %v614 = vunpack.c.h.b16 %v536
    %v615 = vunpack.c.l.b16 %v537
    %v616 = vunpack.c.h.b16 %v537
    %v617 = vunpack.c.l.b16 %v538
    %v618 = vunpack.c.h.b16 %v538
    %v619 = vunpack.c.l.b16 %v539
    %v620 = vunpack.c.h.b16 %v539
    %v621 = vunpack.c.l.b16 %v540
    %v622 = vunpack.c.h.b16 %v540
    %v623 = vunpack.c.l.b16 %v541
    %v624 = vunpack.c.h.b16 %v541
    %v625 = vunpack.c.l.b16 %v542
    %v626 = vunpack.c.h.b16 %v542
    %v627 = vunpack.c.l.b16 %v543
    %v628 = vunpack.c.h.b16 %v543
    %v629 = vunpack.c.l.b16 %v544
    %v630 = vunpack.c.h.b16 %v544
    %v631 = vunpack.c.l.b16 %v545
    %v632 = vunpack.c.h.b16 %v545
    %v633 = vunpack.c.l.b16 %v546
    %v634 = vunpack.c.h.b16 %v546
    %v635 = vunpack.c.l.b16 %v547
    %v636 = vunpack.c.h.b16 %v547
    %v637 = vunpack.c.l.b16 %v548
    %v638 = vunpack.c.h.b16 %v548
    %v639 = vunpack.c.l.b16 %v549
    %v640 = vunpack.c.h.b16 %v549
    %v641 = vunpack.c.l.b16 %v550
    %v642 = vunpack.c.h.b16 %v550
    %v643 = vunpack.c.l.b16 %v551
    %v644 = vunpack.c.h.b16 %v551
    %v645 = vunpack.c.l.b16 %v552
    %v646 = vunpack.c.h.b16 %v552
    %v647 = vunpack.c.l.b16 %v553
    %v648 = vunpack.c.h.b16 %v553
    %v649 = vunpack.c.l.b16 %v554
    %v650 = vunpack.c.h.b16 %v554
    %v651 = vunpack.c.l.b16 %v555
    %v652 = vunpack.c.h.b16 %v555
    %v653 = vunpack.c.l.b16 %v556
    %v654 = vunpack.c.h.b16 %v556
    %v655 = vunpack.c.l.b16 %v557
    %v656 = vunpack.c.h.b16 %v557
    %v657 = vunpack.c.l.b16 %v558
    %v658 = vunpack.c.h.b16 %v558
    %v659 = vunpack.c.l.b16 %v559
    %v660 = vunpack.c.h.b16 %v559
    %v661 = vunpack.c.l.b16 %v560
    %v662 = vunpack.c.h.b16 %v560
    %v663 = vpack.c.b16 %v601, %v599
    %v664 = vpack.c.b16 %v602, %v600
    %v665 = vpack.c.b16 %v605, %v603
    %v666 = vpack.c.b16 %v606, %v604
    %v667 = vpack.c.b16 %v609, %v607
    %v668 = vpack.c.b16 %v610, %v608
    %v669 = vpack.c.b16 %v613, %v611
    %v670 = vpack.c.b16 %v614, %v612
    %v671 = vpack.c.b16 %v617, %v615
    %v672 = vpack.c.b16 %v618, %v616
    %v673 = vpack.c.b16 %v621, %v619
    %v674 = vpack.c.b16 %v622, %v620
    %v675 = vpack.c.b16 %v625, %v623
    %v676 = vpack.c.b16 %v626, %v624
    %v677 = vpack.c.b16 %v629, %v627
    %v678 = vpack.c.b16 %v630, %v628
    %v679 = vpack.c.b16 %v633, %v631
    %v680 = vpack.c.b16 %v634, %v632
    %v681 = vpack.c.b16 %v637, %v635
    %v682 = vpack.c.b16 %v638, %v636
    %v683 = vpack.c.b16 %v641, %v639
    %v684 = vpack.c.b16 %v642, %v640
    %v685 = vpack.c.b16 %v645, %v643
    %v686 = vpack.c.b16 %v646, %v644
    %v687 = vpack.c.b16 %v649, %v647
    %v688 = vpack.c.b16 %v650, %v648
    %v689 = vpack.c.b16 %v653, %v651
    %v690 = vpack.c.b16 %v654, %v652
    %v691 = vpack.c.b16 %v657, %v655
    %v692 = vpack.c.b16 %v658, %v656
    %v693 = vpack.c.b16 %v661, %v659
    %v694 = vpack.c.b16 %v662, %v660
    %727 = vmatpush.bf16.msra.mxu0 %v677
    %728 = vmatpush.bf16.msra.mxu0 %v675
    %729 = vmatpush.bf16.msra.mxu0 %v673
    %730 = vmatpush.bf16.msra.mxu0 %v671
    %731 = vmatpush.bf16.msra.mxu0 %v669
    %732 = vmatpush.bf16.msra.mxu0 %v667
    %733 = vmatpush.bf16.msra.mxu0 %v665
    %734 = vmatpush.bf16.msra.mxu0 %v663
    %735 = vmatmul.bf16.gmra.mxu0 %v527
    %v736 = vpop.f32.mrf.mxu0
    %v737 = vadd.f32 %v563, %v736
    %v738 = vpop.f32.mrf.mxu0
    %v739 = vadd.f32 %v563, %v738
    %740 = vdwg.mxu0
    %741 = vmatpush.bf16.msra.mxu0 %v693
    %742 = vmatpush.bf16.msra.mxu0 %v691
    %743 = vmatpush.bf16.msra.mxu0 %v689
    %744 = vmatpush.bf16.msra.mxu0 %v687
    %745 = vmatpush.bf16.msra.mxu0 %v685
    %746 = vmatpush.bf16.msra.mxu0 %v683
    %747 = vmatpush.bf16.msra.mxu0 %v681
    %748 = vmatpush.bf16.msra.mxu0 %v679
    %749 = vmatmul.bf16.gmra.mxu0 %v528
    %v750 = vpop.f32.mrf.mxu0
    %v751 = vadd.f32 %v737, %v750
    %v752 = vpop.f32.mrf.mxu0
    %v753 = vadd.f32 %v739, %v752
    %754 = vdwg.mxu0
    %755 = vmatpush.bf16.msra.mxu0 %v678
    %756 = vmatpush.bf16.msra.mxu0 %v676
    %757 = vmatpush.bf16.msra.mxu0 %v674
    %758 = vmatpush.bf16.msra.mxu0 %v672
    %759 = vmatpush.bf16.msra.mxu0 %v670
    %760 = vmatpush.bf16.msra.mxu0 %v668
    %761 = vmatpush.bf16.msra.mxu0 %v666
    %762 = vmatpush.bf16.msra.mxu0 %v664
    %763 = vmatmul.bf16.gmra.mxu0 %v527
    %v764 = vpop.f32.mrf.mxu0
    %v765 = vadd.f32 %v564, %v764
    %v766 = vpop.f32.mrf.mxu0
    %v767 = vadd.f32 %v564, %v766
    %768 = vdwg.mxu0
    %769 = vmatpush.bf16.msra.mxu0 %v694
    %770 = vmatpush.bf16.msra.mxu0 %v692
    %771 = vmatpush.bf16.msra.mxu0 %v690
    %772 = vmatpush.bf16.msra.mxu0 %v688
    %773 = vmatpush.bf16.msra.mxu0 %v686
    %774 = vmatpush.bf16.msra.mxu0 %v684
    %775 = vmatpush.bf16.msra.mxu0 %v682
    %776 = vmatpush.bf16.msra.mxu0 %v680
    %777 = vmatmul.bf16.gmra.mxu0 %v528
    %v778 = vpop.f32.mrf.mxu0
    %v779 = vadd.f32 %v765, %v778
    %v780 = vpop.f32.mrf.mxu0
    %v781 = vadd.f32 %v767, %v780
    %782 = vdwg.mxu0
    %v783 = vmax.f32 %v751, 0.0
    %v784 = vmax.f32 %v779, 0.0
    %v785 = vmax.f32 %v753, 0.0
    %v786 = vmax.f32 %v781, 0.0
    %v787 = vpack.c.bf16 %v785, %v783
    %v788 = vpack.c.bf16 %v786, %v784
    %v789 = vld [vmem:[#allocation11] sm:$0xf]
    %v790 = vld [vmem:[#allocation11 + $0x4] sm:$0xf]
    %v791 = vld [vmem:[#allocation11 + $0x8] sm:$0xf]
    %v792 = vld [vmem:[#allocation11 + $0xc] sm:$0xf]
    %v793 = vld [vmem:[#allocation11 + $0x10] sm:$0xf]
    %v794 = vld [vmem:[#allocation11 + $0x14] sm:$0xf]
    %v795 = vld [vmem:[#allocation11 + $0x18] sm:$0xf]
    %v796 = vld [vmem:[#allocation11 + $0x1c] sm:$0xf]
    %v797 = vld [vmem:[#allocation11 + $0x20] sm:$0xf]
    %v798 = vld [vmem:[#allocation11 + $0x24] sm:$0xf]
    %v799 = vld [vmem:[#allocation11 + $0x28] sm:$0xf]
    %v800 = vld [vmem:[#allocation11 + $0x2c] sm:$0xf]
    %v801 = vld [vmem:[#allocation11 + $0x30] sm:$0xf]
    %v802 = vld [vmem:[#allocation11 + $0x34] sm:$0xf]
    %v803 = vld [vmem:[#allocation11 + $0x38] sm:$0xf]
    %v804 = vld [vmem:[#allocation11 + $0x3c] sm:$0xf]
    %v805 = vld [vmem:[#allocation11 + $0x40] sm:$0xf]
    %v806 = vld [vmem:[#allocation11 + $0x44] sm:$0xf]
    %v807 = vld [vmem:[#allocation11 + $0x48] sm:$0xf]
    %v808 = vld [vmem:[#allocation11 + $0x4c] sm:$0xf]
    %v809 = vld [vmem:[#allocation11 + $0x50] sm:$0xf]
    %v810 = vld [vmem:[#allocation11 + $0x54] sm:$0xf]
    %v811 = vld [vmem:[#allocation11 + $0x58] sm:$0xf]
    %v812 = vld [vmem:[#allocation11 + $0x5c] sm:$0xf]
    %v813 = vld [vmem:[#allocation11 + $0x60] sm:$0xf]
    %v814 = vld [vmem:[#allocation11 + $0x64] sm:$0xf]
    %v815 = vld [vmem:[#allocation11 + $0x68] sm:$0xf]
    %v816 = vld [vmem:[#allocation11 + $0x6c] sm:$0xf]
    %v817 = vld [vmem:[#allocation11 + $0x70] sm:$0xf]
    %v818 = vld [vmem:[#allocation11 + $0x74] sm:$0xf]
    %v819 = vld [vmem:[#allocation11 + $0x78] sm:$0xf]
    %v820 = vld [vmem:[#allocation11 + $0x7c] sm:$0xf]
    %v821 = vld [vmem:[%s8] sm:$0x1]
    %v823 = vperm.slane %v821, 0
    %v857 = vunpack.c.l.b16 %v789
    %v858 = vunpack.c.l.b16 %v790
    %v859 = vunpack.c.l.b16 %v791
    %v860 = vunpack.c.l.b16 %v792
    %v861 = vunpack.c.l.b16 %v793
    %v862 = vunpack.c.l.b16 %v794
    %v863 = vunpack.c.l.b16 %v795
    %v864 = vunpack.c.l.b16 %v796
    %v865 = vunpack.c.l.b16 %v797
    %v866 = vunpack.c.l.b16 %v798
    %v867 = vunpack.c.l.b16 %v799
    %v868 = vunpack.c.l.b16 %v800
    %v869 = vunpack.c.l.b16 %v801
    %v870 = vunpack.c.l.b16 %v802
    %v871 = vunpack.c.l.b16 %v803
    %v872 = vunpack.c.l.b16 %v804
    %v873 = vunpack.c.l.b16 %v805
    %v874 = vunpack.c.l.b16 %v806
    %v875 = vunpack.c.l.b16 %v807
    %v876 = vunpack.c.l.b16 %v808
    %v877 = vunpack.c.l.b16 %v809
    %v878 = vunpack.c.l.b16 %v810
    %v879 = vunpack.c.l.b16 %v811
    %v880 = vunpack.c.l.b16 %v812
    %v881 = vunpack.c.l.b16 %v813
    %v882 = vunpack.c.l.b16 %v814
    %v883 = vunpack.c.l.b16 %v815
    %v884 = vunpack.c.l.b16 %v816
    %v885 = vunpack.c.l.b16 %v817
    %v886 = vunpack.c.l.b16 %v818
    %v887 = vunpack.c.l.b16 %v819
    %v888 = vunpack.c.l.b16 %v820
    %v889 = vpack.c.b16 %v858, %v857
    %v890 = vpack.c.b16 %v860, %v859
    %v891 = vpack.c.b16 %v862, %v861
    %v892 = vpack.c.b16 %v864, %v863
    %v893 = vpack.c.b16 %v866, %v865
    %v894 = vpack.c.b16 %v868, %v867
    %v895 = vpack.c.b16 %v870, %v869
    %v896 = vpack.c.b16 %v872, %v871
    %v897 = vpack.c.b16 %v874, %v873
    %v898 = vpack.c.b16 %v876, %v875
    %v899 = vpack.c.b16 %v878, %v877
    %v900 = vpack.c.b16 %v880, %v879
    %v901 = vpack.c.b16 %v882, %v881
    %v902 = vpack.c.b16 %v884, %v883
    %v903 = vpack.c.b16 %v886, %v885
    %v904 = vpack.c.b16 %v888, %v887
    %921 = vmatpush.bf16.msra.mxu0 %v896
    %922 = vmatpush.bf16.msra.mxu0 %v895
    %923 = vmatpush.bf16.msra.mxu0 %v894
    %924 = vmatpush.bf16.msra.mxu0 %v893
    %925 = vmatpush.bf16.msra.mxu0 %v892
    %926 = vmatpush.bf16.msra.mxu0 %v891
    %927 = vmatpush.bf16.msra.mxu0 %v890
    %928 = vmatpush.bf16.msra.mxu0 %v889
    %929 = vmatmul.bf16.gmra.mxu0 %v787
    %v930 = vpop.f32.mrf.mxu0
    %v931 = vadd.f32 %v823, %v930
    %v932 = vpop.f32.mrf.mxu0
    %v933 = vadd.f32 %v823, %v932
    %934 = vdwg.mxu0
    %935 = vmatpush.bf16.msra.mxu0 %v904
    %936 = vmatpush.bf16.msra.mxu0 %v903
    %937 = vmatpush.bf16.msra.mxu0 %v902
    %938 = vmatpush.bf16.msra.mxu0 %v901
    %939 = vmatpush.bf16.msra.mxu0 %v900
    %940 = vmatpush.bf16.msra.mxu0 %v899
    %941 = vmatpush.bf16.msra.mxu0 %v898
    %942 = vmatpush.bf16.msra.mxu0 %v897
    %943 = vmatmul.bf16.gmra.mxu0 %v788
    %v944 = vpop.f32.mrf.mxu0
    %v945 = vadd.f32 %v931, %v944
    %v946 = vpop.f32.mrf.mxu0
    %v947 = vadd.f32 %v933, %v946
    %948 = vdwg.mxu0
    %v949 = vpack.c.bf16 %v945, %v945
    %v950 = vpack.c.bf16 %v947, %v947
    %951 = vst [vmem:[#allocation13] sm:$0xf] %v949
    %952 = vst [vmem:[#allocation13 + $0x4] sm:$0xf] %v950
    // Predicated region
    $region62: #{tpu_custom_call.1} parent=1 // pred_check
      _
    $region63: #{tpu_custom_call.1} parent=1 // pred_check_branch
      %954 = sbr.rel (0) target = $region65
    $region64: #{tpu_custom_call.1} parent=1 // pred_region
      %956 = vsyncadd [#allocation4], 0
      %s957 = sshll.u32 [#allocation13], 4
      %s958 = int_to_ptr.vmem [resolvable:$true] %s957
      %s959 = sshll.u32 %s9, 4
      %s960 = int_to_ptr.hbm [resolvable:$true] %s959
      %965 = dma.vmem_to_hbm [thread:$0]  %s958, 128, %s960, [#allocation4], 64, 64, 4
    $region65: #{tpu_custom_call.1} parent=1 // pred_fallthru
      _
    // Predicated region
    $region66: #{tpu_custom_call.1} parent=1 // pred_check
      _
    $region67: #{tpu_custom_call.1} parent=1 // pred_check_branch
      %967 = sbr.rel (0) target = $region69
    $region68: #{tpu_custom_call.1} parent=1 // pred_region
      %969 = dma.done [#allocation4], 128
    $region69: #{tpu_custom_call.1} parent=1 // pred_fallthru
      _
    %970 = vsyncpa [#allocation3], 1
    %971 = vsyncpa [#allocation6], 1
    %972 = vsyncpa [#allocation9], 1
    %973 = vsyncpa [#allocation12], 1
    %974 = vsyncpa [#allocation4], 1

</llo_original>
